<compile_context>
chip_gen: v6e
topology: v6e:2x2x1
jax: 0.10.0
libtpu: 0.0.40
codegen_flags: <defaults>
</compile_context>

<pallas_src>
import functools

import jax
import jax.numpy as jnp
from jax.experimental import pallas as pl
from jax.experimental.pallas import tpu as pltpu


def _round_up(x, m):
    return pl.cdiv(x, m) * m


def _bn_fused(h, gamma, beta, n_real, eps):
    """Training-mode batch-norm over the node axis, one traversal for stats,
    one FMA per element for the normalize (scale/shift pre-folded)."""
    inv_n = 1.0 / float(n_real)
    s = jnp.sum(h, axis=0, keepdims=True)
    ss = jnp.sum(h * h, axis=0, keepdims=True)
    mean = s * inv_n
    var = jnp.maximum(ss * inv_n - mean * mean, 0.0)   # biased variance
    scale = gamma * jax.lax.rsqrt(var + eps)
    shift = beta - mean * scale
    return h * scale + shift


def _mask_pad_rows(h, n_real, n_pad):
    """Zero rows that are node padding (static no-op when no padding)."""
    if n_real == n_pad:
        return h
    row = jax.lax.broadcasted_iota(jnp.int32, h.shape, 0)
    return jnp.where(row < n_real, h, 0.0)


def mlp_imdb_kernel(x_ref, m1_ref, m2_ref,
                    w1_ref, g1_ref, be1_ref,        # MLP_Layer linear1 + inner BN
                    w2_ref,                         # MLP_Layer linear2
                    g2_ref, be2_ref,                # outer norm_layer
                    wp1_ref, bp1_ref, wp2_ref, bp2_ref,   # GraphPredict head
                    out_ref,
                    *, n_real, n_pad, eps):
    f32 = jnp.float32
    bf16 = jnp.bfloat16

    x = x_ref[...]                       # [N_pad, D_pad] f32 (zero-padded)

    # h_n = F.dropout(nfeat, p=dropout*init_dp, training=True)
    # mask already holds {0, 1/(1-p)} -> single multiply per element.
    h = x * m1_ref[...]

    # conv_layer (MLP_Layer): Linear -> BN -> ReLU -> Linear
    # (linear1 bias dropped: cancelled exactly by training-mode BN)
    h = jnp.dot(h.astype(bf16), w1_ref[...], preferred_element_type=f32)
    h = _bn_fused(h, g1_ref[...], be1_ref[...], n_real, eps)
    h = _mask_pad_rows(h, n_real, n_pad)
    h = jnp.maximum(h, 0.0)
    # (linear2 bias dropped: cancelled exactly by the outer training-mode BN)
    h = jnp.dot(h.astype(bf16), w2_ref[...], preferred_element_type=f32)

    # outer norm_layer + LocalActivation (ReLU) + dropout
    h = _bn_fused(h, g2_ref[...], be2_ref[...], n_real, eps)
    h = _mask_pad_rows(h, n_real, n_pad)
    h = jnp.maximum(h, 0.0)
    h = h * m2_ref[...]

    # GlobalPooling: mean over the real nodes -> [1, D_pad]
    g = jnp.sum(h, axis=0, keepdims=True) * (1.0 / float(n_real))

    # GraphPredict: Linear(D, D//2) -> ReLU -> Linear(D//2, out)
    p = jnp.dot(g.astype(bf16), wp1_ref[...], preferred_element_type=f32) + bp1_ref[...]
    p = jnp.maximum(p, 0.0)
    p = jnp.dot(p.astype(bf16), wp2_ref[...], preferred_element_type=f32) + bp2_ref[...]

    out_ref[...] = p.astype(out_ref.dtype)      # lane-dense [1, OUT_pad] store


def _pad2(a, rows, cols):
    r, c = a.shape
    return jnp.pad(a, ((0, rows - r), (0, cols - c)))


def mlp_imdb_forward(nfeat, params, *, key, dropout_p, init_dp, output_dim):
    """nfeat: [N_nodes, embed_dim] f32.  Returns [1, output_dim] prediction."""
    n, d = nfeat.shape
    hid = d // 2

    n_pad = _round_up(n, 8)          # sublane alignment
    d_pad = _round_up(d, 128)        # lane-dense feature dim
    h_pad = _round_up(hid, 128)
    o_pad = _round_up(output_dim, 128)

    # ---- deterministic, pre-scaled dropout masks (training=True) ----
    k1, k2 = jax.random.split(key)
    p_init = dropout_p * init_dp

    def make_mask(k, p):
        if p <= 0.0:
            return jnp.ones((n_pad, d_pad), jnp.float32)
        keep = 1.0 - p
        m = jax.random.bernoulli(k, keep, (n_pad, d_pad)).astype(jnp.float32)
        return m * (1.0 / keep)

    m1 = make_mask(k1, p_init)
    m2 = make_mask(k2, dropout_p)

    # ---- pad operands; matmul weights go to bf16 (f32 accumulation) ----
    x_p = _pad2(nfeat.astype(jnp.float32), n_pad, d_pad)
    w1 = _pad2(params["w1"], d_pad, d_pad).astype(jnp.bfloat16)
    w2 = _pad2(params["w2"], d_pad, d_pad).astype(jnp.bfloat16)
    wp1 = _pad2(params["wp1"], d_pad, h_pad).astype(jnp.bfloat16)
    wp2 = _pad2(params["wp2"], h_pad, o_pad).astype(jnp.bfloat16)
    g1 = _pad2(params["g1"], 1, d_pad)       # padded gamma/beta are 0 -> padded
    be1 = _pad2(params["be1"], 1, d_pad)     # feature columns stay exactly 0
    g2 = _pad2(params["g2"], 1, d_pad)
    be2 = _pad2(params["be2"], 1, d_pad)
    bp1 = _pad2(params["bp1"], 1, h_pad)
    bp2 = _pad2(params["bp2"], 1, o_pad)
    # params["b1"] / params["b2"] are intentionally not passed: a per-feature
    # constant bias is cancelled exactly by the following training-mode BN.

    kernel = functools.partial(mlp_imdb_kernel, n_real=n, n_pad=n_pad, eps=1e-5)
    vmem = pl.BlockSpec(memory_space=pltpu.MemorySpace.VMEM)

    out = pl.pallas_call(
        kernel,
        out_shape=jax.ShapeDtypeStruct((1, o_pad), jnp.float32),
        in_specs=[vmem] * 13,
        out_specs=vmem,
    )(x_p, m1, m2,
      w1, g1, be1,
      w2,
      g2, be2,
      wp1, bp1, wp2, bp2)

    return out[:, :output_dim]


def init_params(key, embed_dim, output_dim):
    hidden_dim = embed_dim // 2
    ks = jax.random.split(key, 8)
    scale = 0.1
    return {
        # MLP_Layer: input_layer / output_layer (weights stored [in, out])
        "w1": scale * jax.random.normal(ks[0], (embed_dim, embed_dim), jnp.float32),
        "b1": scale * jax.random.normal(ks[1], (1, embed_dim), jnp.float32),  # cancelled by BN
        "w2": scale * jax.random.normal(ks[2], (embed_dim, embed_dim), jnp.float32),
        "b2": scale * jax.random.normal(ks[3], (1, embed_dim), jnp.float32),  # cancelled by BN
        # inner NormalizeGNN (affine) + outer norm_layer (affine)
        "g1": jnp.ones((1, embed_dim), jnp.float32),
        "be1": jnp.zeros((1, embed_dim), jnp.float32),
        "g2": jnp.ones((1, embed_dim), jnp.float32),
        "be2": jnp.zeros((1, embed_dim), jnp.float32),
        # GraphPredict
        "wp1": scale * jax.random.normal(ks[4], (embed_dim, hidden_dim), jnp.float32),
        "bp1": scale * jax.random.normal(ks[5], (1, hidden_dim), jnp.float32),
        "wp2": scale * jax.random.normal(ks[6], (hidden_dim, output_dim), jnp.float32),
        "bp2": scale * jax.random.normal(ks[7], (1, output_dim), jnp.float32),
    }


if __name__ == "__main__":
    # Small shapes consistent with the module: single graph, 8 nodes,
    # embed_dim=32, output_dim=4 (graph-level prediction).
    N_NODES = 8
    EMBED_DIM = 32
    OUTPUT_DIM = 4
    DROPOUT = 0.5
    INIT_DP = 0.5

    key = jax.random.PRNGKey(0)
    k_feat, k_param, k_drop = jax.random.split(key, 3)
    nfeat = jax.random.normal(k_feat, (N_NODES, EMBED_DIM), jnp.float32)
    params = init_params(k_param, EMBED_DIM, OUTPUT_DIM)

    # TODO(synk): training-mode BN here does not track running statistics, so
    # eval-mode parity with the PyTorch module's BatchNorm buffers is not covered.
    out = mlp_imdb_forward(
        nfeat, params, key=k_drop, dropout_p=DROPOUT, init_dp=INIT_DP,
        output_dim=OUTPUT_DIM)
    out = jax.block_until_ready(out)

    assert out.shape == (1, OUTPUT_DIM)
    assert bool(jnp.all(jnp.isfinite(out)))
    print("KERNEL_OK")
</pallas_src>

<mosaic_0001>
module attributes {stable_mosaic.version = 11 : i64} {
  func.func @mlp_imdb_kernel(%arg0: memref<8x128xf32, #tpu.memory_space<vmem>>, %arg1: memref<8x128xf32, #tpu.memory_space<vmem>>, %arg2: memref<8x128xf32, #tpu.memory_space<vmem>>, %arg3: memref<128x128xbf16, #tpu.memory_space<vmem>>, %arg4: memref<1x128xf32, #tpu.memory_space<vmem>>, %arg5: memref<1x128xf32, #tpu.memory_space<vmem>>, %arg6: memref<128x128xbf16, #tpu.memory_space<vmem>>, %arg7: memref<1x128xf32, #tpu.memory_space<vmem>>, %arg8: memref<1x128xf32, #tpu.memory_space<vmem>>, %arg9: memref<128x128xbf16, #tpu.memory_space<vmem>>, %arg10: memref<1x128xf32, #tpu.memory_space<vmem>>, %arg11: memref<128x128xbf16, #tpu.memory_space<vmem>>, %arg12: memref<1x128xf32, #tpu.memory_space<vmem>>, %arg13: memref<1x128xf32, #tpu.memory_space<vmem>>) attributes {dimension_semantics = [], scalar_prefetch = 0 : i64, scratch_operands = 0 : i64, tpu.core_type = #tpu.core_type<tc>} {
    %c0 = arith.constant 0 : index
    %c0_0 = arith.constant 0 : index
    %0 = vector.load %arg0[%c0, %c0_0] : memref<8x128xf32, #tpu.memory_space<vmem>>, vector<8x128xf32>
    %c0_1 = arith.constant 0 : index
    %c0_2 = arith.constant 0 : index
    %1 = vector.load %arg1[%c0_1, %c0_2] : memref<8x128xf32, #tpu.memory_space<vmem>>, vector<8x128xf32>
    %2 = arith.mulf %0, %1 : vector<8x128xf32>
    %3 = arith.truncf %2 : vector<8x128xf32> to vector<8x128xbf16>
    %c0_3 = arith.constant 0 : index
    %c0_4 = arith.constant 0 : index
    %4 = vector.load %arg3[%c0_3, %c0_4] : memref<128x128xbf16, #tpu.memory_space<vmem>>, vector<128x128xbf16>
    %cst = arith.constant dense<0.000000e+00> : vector<8x128xf32>
    %5 = tpu.matmul %3, %4, %cst {dimension_numbers = #tpu.dot_dimension_numbers<[1], [0], [0], [1], [0, 0, 1, 1], [], []>} : vector<8x128xbf16>, vector<128x128xbf16>, vector<8x128xf32> -> vector<8x128xf32>
    %c0_5 = arith.constant 0 : index
    %c0_6 = arith.constant 0 : index
    %6 = vector.load %arg4[%c0_5, %c0_6] : memref<1x128xf32, #tpu.memory_space<vmem>>, vector<1x128xf32>
    %c0_7 = arith.constant 0 : index
    %c0_8 = arith.constant 0 : index
    %7 = vector.load %arg5[%c0_7, %c0_8] : memref<1x128xf32, #tpu.memory_space<vmem>>, vector<1x128xf32>
    %cst_9 = arith.constant dense<0.000000e+00> : vector<128xf32>
    %8 = vector.multi_reduction <add>, %5, %cst_9 [0] : vector<8x128xf32> to vector<128xf32>
    %9 = vector.shape_cast %8 : vector<128xf32> to vector<1x128xf32>
    %10 = arith.mulf %5, %5 : vector<8x128xf32>
    %cst_10 = arith.constant dense<0.000000e+00> : vector<128xf32>
    %11 = vector.multi_reduction <add>, %10, %cst_10 [0] : vector<8x128xf32> to vector<128xf32>
    %12 = vector.shape_cast %11 : vector<128xf32> to vector<1x128xf32>
    %cst_11 = arith.constant 1.250000e-01 : f32
    %13 = vector.broadcast %cst_11 : f32 to vector<1x128xf32>
    %14 = arith.mulf %9, %13 : vector<1x128xf32>
    %cst_12 = arith.constant 1.250000e-01 : f32
    %15 = vector.broadcast %cst_12 : f32 to vector<1x128xf32>
    %16 = arith.mulf %12, %15 : vector<1x128xf32>
    %17 = arith.mulf %14, %14 : vector<1x128xf32>
    %18 = arith.subf %16, %17 : vector<1x128xf32>
    %cst_13 = arith.constant 0.000000e+00 : f32
    %19 = vector.broadcast %cst_13 : f32 to vector<1x128xf32>
    %20 = arith.maximumf %18, %19 : vector<1x128xf32>
    %cst_14 = arith.constant 9.99999974E-6 : f32
    %21 = vector.broadcast %cst_14 : f32 to vector<1x128xf32>
    %22 = arith.addf %20, %21 : vector<1x128xf32>
    %23 = math.rsqrt %22 : vector<1x128xf32>
    %24 = arith.mulf %6, %23 : vector<1x128xf32>
    %25 = arith.mulf %14, %24 : vector<1x128xf32>
    %26 = arith.subf %7, %25 : vector<1x128xf32>
    %27 = vector.broadcast %24 : vector<1x128xf32> to vector<8x128xf32>
    %28 = arith.mulf %5, %27 : vector<8x128xf32>
    %29 = vector.broadcast %26 : vector<1x128xf32> to vector<8x128xf32>
    %30 = arith.addf %28, %29 : vector<8x128xf32>
    %cst_15 = arith.constant 0.000000e+00 : f32
    %31 = vector.broadcast %cst_15 : f32 to vector<8x128xf32>
    %32 = arith.maximumf %30, %31 : vector<8x128xf32>
    %33 = arith.truncf %32 : vector<8x128xf32> to vector<8x128xbf16>
    %c0_16 = arith.constant 0 : index
    %c0_17 = arith.constant 0 : index
    %34 = vector.load %arg6[%c0_16, %c0_17] : memref<128x128xbf16, #tpu.memory_space<vmem>>, vector<128x128xbf16>
    %cst_18 = arith.constant dense<0.000000e+00> : vector<8x128xf32>
    %35 = tpu.matmul %33, %34, %cst_18 {dimension_numbers = #tpu.dot_dimension_numbers<[1], [0], [0], [1], [0, 0, 1, 1], [], []>} : vector<8x128xbf16>, vector<128x128xbf16>, vector<8x128xf32> -> vector<8x128xf32>
    %c0_19 = arith.constant 0 : index
    %c0_20 = arith.constant 0 : index
    %36 = vector.load %arg7[%c0_19, %c0_20] : memref<1x128xf32, #tpu.memory_space<vmem>>, vector<1x128xf32>
    %c0_21 = arith.constant 0 : index
    %c0_22 = arith.constant 0 : index
    %37 = vector.load %arg8[%c0_21, %c0_22] : memref<1x128xf32, #tpu.memory_space<vmem>>, vector<1x128xf32>
    %cst_23 = arith.constant dense<0.000000e+00> : vector<128xf32>
    %38 = vector.multi_reduction <add>, %35, %cst_23 [0] : vector<8x128xf32> to vector<128xf32>
    %39 = vector.shape_cast %38 : vector<128xf32> to vector<1x128xf32>
    %40 = arith.mulf %35, %35 : vector<8x128xf32>
    %cst_24 = arith.constant dense<0.000000e+00> : vector<128xf32>
    %41 = vector.multi_reduction <add>, %40, %cst_24 [0] : vector<8x128xf32> to vector<128xf32>
    %42 = vector.shape_cast %41 : vector<128xf32> to vector<1x128xf32>
    %cst_25 = arith.constant 1.250000e-01 : f32
    %43 = vector.broadcast %cst_25 : f32 to vector<1x128xf32>
    %44 = arith.mulf %39, %43 : vector<1x128xf32>
    %cst_26 = arith.constant 1.250000e-01 : f32
    %45 = vector.broadcast %cst_26 : f32 to vector<1x128xf32>
    %46 = arith.mulf %42, %45 : vector<1x128xf32>
    %47 = arith.mulf %44, %44 : vector<1x128xf32>
    %48 = arith.subf %46, %47 : vector<1x128xf32>
    %cst_27 = arith.constant 0.000000e+00 : f32
    %49 = vector.broadcast %cst_27 : f32 to vector<1x128xf32>
    %50 = arith.maximumf %48, %49 : vector<1x128xf32>
    %cst_28 = arith.constant 9.99999974E-6 : f32
    %51 = vector.broadcast %cst_28 : f32 to vector<1x128xf32>
    %52 = arith.addf %50, %51 : vector<1x128xf32>
    %53 = math.rsqrt %52 : vector<1x128xf32>
    %54 = arith.mulf %36, %53 : vector<1x128xf32>
    %55 = arith.mulf %44, %54 : vector<1x128xf32>
    %56 = arith.subf %37, %55 : vector<1x128xf32>
    %57 = vector.broadcast %54 : vector<1x128xf32> to vector<8x128xf32>
    %58 = arith.mulf %35, %57 : vector<8x128xf32>
    %59 = vector.broadcast %56 : vector<1x128xf32> to vector<8x128xf32>
    %60 = arith.addf %58, %59 : vector<8x128xf32>
    %cst_29 = arith.constant 0.000000e+00 : f32
    %61 = vector.broadcast %cst_29 : f32 to vector<8x128xf32>
    %62 = arith.maximumf %60, %61 : vector<8x128xf32>
    %c0_30 = arith.constant 0 : index
    %c0_31 = arith.constant 0 : index
    %63 = vector.load %arg2[%c0_30, %c0_31] : memref<8x128xf32, #tpu.memory_space<vmem>>, vector<8x128xf32>
    %64 = arith.mulf %62, %63 : vector<8x128xf32>
    %cst_32 = arith.constant dense<0.000000e+00> : vector<128xf32>
    %65 = vector.multi_reduction <add>, %64, %cst_32 [0] : vector<8x128xf32> to vector<128xf32>
    %66 = vector.shape_cast %65 : vector<128xf32> to vector<1x128xf32>
    %cst_33 = arith.constant 1.250000e-01 : f32
    %67 = vector.broadcast %cst_33 : f32 to vector<1x128xf32>
    %68 = arith.mulf %66, %67 : vector<1x128xf32>
    %69 = arith.truncf %68 : vector<1x128xf32> to vector<1x128xbf16>
    %c0_34 = arith.constant 0 : index
    %c0_35 = arith.constant 0 : index
    %70 = vector.load %arg9[%c0_34, %c0_35] : memref<128x128xbf16, #tpu.memory_space<vmem>>, vector<128x128xbf16>
    %cst_36 = arith.constant dense<0.000000e+00> : vector<1x128xf32>
    %71 = tpu.matmul %69, %70, %cst_36 {dimension_numbers = #tpu.dot_dimension_numbers<[1], [0], [0], [1], [0, 0, 1, 1], [], []>} : vector<1x128xbf16>, vector<128x128xbf16>, vector<1x128xf32> -> vector<1x128xf32>
    %c0_37 = arith.constant 0 : index
    %c0_38 = arith.constant 0 : index
    %72 = vector.load %arg10[%c0_37, %c0_38] : memref<1x128xf32, #tpu.memory_space<vmem>>, vector<1x128xf32>
    %73 = arith.addf %71, %72 : vector<1x128xf32>
    %cst_39 = arith.constant 0.000000e+00 : f32
    %74 = vector.broadcast %cst_39 : f32 to vector<1x128xf32>
    %75 = arith.maximumf %73, %74 : vector<1x128xf32>
    %76 = arith.truncf %75 : vector<1x128xf32> to vector<1x128xbf16>
    %c0_40 = arith.constant 0 : index
    %c0_41 = arith.constant 0 : index
    %77 = vector.load %arg11[%c0_40, %c0_41] : memref<128x128xbf16, #tpu.memory_space<vmem>>, vector<128x128xbf16>
    %cst_42 = arith.constant dense<0.000000e+00> : vector<1x128xf32>
    %78 = tpu.matmul %76, %77, %cst_42 {dimension_numbers = #tpu.dot_dimension_numbers<[1], [0], [0], [1], [0, 0, 1, 1], [], []>} : vector<1x128xbf16>, vector<128x128xbf16>, vector<1x128xf32> -> vector<1x128xf32>
    %c0_43 = arith.constant 0 : index
    %c0_44 = arith.constant 0 : index
    %79 = vector.load %arg12[%c0_43, %c0_44] : memref<1x128xf32, #tpu.memory_space<vmem>>, vector<1x128xf32>
    %80 = arith.addf %78, %79 : vector<1x128xf32>
    %c0_45 = arith.constant 0 : index
    %c0_46 = arith.constant 0 : index
    %81 = vector.load %arg13[%c0_45, %c0_46] : memref<1x128xf32, #tpu.memory_space<vmem>>, vector<1x128xf32>
    tpu.vector_store %arg13[%c0_45, %c0_46], %80 {strides = array<i32>} : memref<1x128xf32, #tpu.memory_space<vmem>>, vector<1x128xf32>,
    return
  }
}

</mosaic_0001>

<llo_original>
// kernel: tpu_custom_call.1
$region0: #{tpu_custom_call.1}
  #allocation0 [shape = 'u32[]', space=smem, size = 0x4, offset = 0x4, fixed_abs, tag = 'smem constant byte address 0x4 - core index']
  #allocation1 [shape = 'u32[144,128]{1,0:T(1,128)}', space=vmem, size = 0x12000, scoped, tag = 'internal scratch']
  %s0 = inlined_call_operand.hbm [shape: f32[8,128], index: 0, kind: input, shape index: {}]
  %s1 = inlined_call_operand.hbm [shape: f32[8,128], index: 1, kind: input, shape index: {}]
  %s2 = inlined_call_operand.hbm [shape: f32[8,128], index: 2, kind: input, shape index: {}]
  %s3 = inlined_call_operand.hbm [shape: bf16[128,128], index: 3, kind: input, shape index: {}]
  %s4 = inlined_call_operand.vmem [shape: f32[1,128], index: 4, kind: input, shape index: {}]
  %s5 = inlined_call_operand.vmem [shape: f32[1,128], index: 5, kind: input, shape index: {}]
  %s6 = inlined_call_operand.hbm [shape: bf16[128,128], index: 6, kind: input, shape index: {}]
  %s7 = inlined_call_operand.vmem [shape: f32[1,128], index: 7, kind: input, shape index: {}]
  %s8 = inlined_call_operand.vmem [shape: f32[1,128], index: 8, kind: input, shape index: {}]
  %s9 = inlined_call_operand.hbm [shape: bf16[128,128], index: 9, kind: input, shape index: {}]
  %s10 = inlined_call_operand.vmem [shape: f32[1,128], index: 10, kind: input, shape index: {}]
  %s11 = inlined_call_operand.hbm [shape: bf16[128,128], index: 11, kind: input, shape index: {}]
  %s12 = inlined_call_operand.vmem [shape: f32[1,128], index: 12, kind: input, shape index: {}]
  %s13 = inlined_call_operand.hbm [shape: f32[1,128], index: 13, kind: output, shape index: {}]
  %s14 = sld [smem:[#allocation0]]
  $region90: #{tpu_custom_call.1} parent=0
    _
  %s16 = ssub.s32 1, %s14
  %s17 = scalar_select 0, %s16, %s14
  $region1: #{tpu_custom_call.1} parent=0
    #allocation2 [shape = 'u8[4096]{0}', space=vmem, size = 0x1000, scoped, tag = 'input window, operand 0, single buffered']
    #allocation3 [shape = 's32[1]{0}', space=sflag, size = 0x4, scoped, tag = 'scoped memory for tpu_custom_call.1']
    #allocation4 [shape = 's32[1]{0}', space=sflag, size = 0x4, scoped, tag = 'scoped memory for tpu_custom_call.1']
    #allocation5 [shape = 'u8[4096]{0}', space=vmem, size = 0x1000, scoped, tag = 'input window, operand 1, single buffered']
    #allocation6 [shape = 's32[1]{0}', space=sflag, size = 0x4, scoped, tag = 'scoped memory for tpu_custom_call.1']
    #allocation7 [shape = 'u8[4096]{0}', space=vmem, size = 0x1000, scoped, tag = 'input window, operand 2, single buffered']
    #allocation8 [shape = 'u8[32768]{0}', space=vmem, size = 0x8000, scoped, tag = 'input window, operand 3, single buffered']
    #allocation9 [shape = 's32[1]{0}', space=sflag, size = 0x4, scoped, tag = 'scoped memory for tpu_custom_call.1']
    #allocation10 [shape = 'u8[32768]{0}', space=vmem, size = 0x8000, scoped, tag = 'input window, operand 6, single buffered']
    #allocation11 [shape = 'u8[32768]{0}', space=vmem, size = 0x8000, scoped, tag = 'input window, operand 9, single buffered']
    #allocation12 [shape = 's32[1]{0}', space=sflag, size = 0x4, scoped, tag = 'scoped memory for tpu_custom_call.1']
    #allocation13 [shape = 'u8[32768]{0}', space=vmem, size = 0x8000, scoped, tag = 'input window, operand 11, single buffered']
    #allocation14 [shape = 'u8[512]{0}', space=vmem, size = 0x400, scoped, tag = 'output window, operand 0, single buffered']
    %18 = vsyncpa [#allocation3], 0
    %19 = vsyncpa [#allocation6], 0
    %20 = vsyncpa [#allocation9], 0
    %21 = vsyncpa [#allocation12], 0
    %22 = vsyncpa [#allocation4], 0
    // Predicated region
    $region2: #{tpu_custom_call.1} parent=1 // pred_check
      _
    $region3: #{tpu_custom_call.1} parent=1 // pred_check_branch
      %24 = sbr.rel (0) target = $region5
    $region4: #{tpu_custom_call.1} parent=1 // pred_region
      %s26 = ssub.s32 128, 128
      %27 = vsyncadd [#allocation3], %s26
      %s29 = sshll.u32 [#allocation2], 4
      %s30 = int_to_ptr.vmem [resolvable:$true] %s29
      %32 = dma.hbm_to_vmem [thread:$0]  %s0, 128, %s30, [#allocation3]
    $region5: #{tpu_custom_call.1} parent=1 // pred_fallthru
      _
    // Predicated region
    $region6: #{tpu_custom_call.1} parent=1 // pred_check
      _
    $region7: #{tpu_custom_call.1} parent=1 // pred_check_branch
      %34 = sbr.rel (0) target = $region9
    $region8: #{tpu_custom_call.1} parent=1 // pred_region
      %s36 = ssub.s32 128, 128
      %37 = vsyncadd [#allocation6], %s36
      %s39 = sshll.u32 [#allocation5], 4
      %s40 = int_to_ptr.vmem [resolvable:$true] %s39
      %42 = dma.hbm_to_vmem [thread:$0]  %s1, 128, %s40, [#allocation6]
    $region9: #{tpu_custom_call.1} parent=1 // pred_fallthru
      _
    // Predicated region
    $region10: #{tpu_custom_call.1} parent=1 // pred_check
      _
    $region11: #{tpu_custom_call.1} parent=1 // pred_check_branch
      %44 = sbr.rel (0) target = $region13
    $region12: #{tpu_custom_call.1} parent=1 // pred_region
      %s46 = ssub.s32 128, 128
      %47 = vsyncadd [#allocation6], %s46
      %s49 = sshll.u32 [#allocation7], 4
      %s50 = int_to_ptr.vmem [resolvable:$true] %s49
      %52 = dma.hbm_to_vmem [thread:$0]  %s2, 128, %s50, [#allocation6]
    $region13: #{tpu_custom_call.1} parent=1 // pred_fallthru
      _
    // Predicated region
    $region14: #{tpu_custom_call.1} parent=1 // pred_check
      _
    $region15: #{tpu_custom_call.1} parent=1 // pred_check_branch
      %54 = sbr.rel (0) target = $region17
    $region16: #{tpu_custom_call.1} parent=1 // pred_region
      %s56 = ssub.s32 1024, 1024
      %57 = vsyncadd [#allocation9], %s56
      %s58 = sshll.u32 [#allocation8], 4
      %s59 = int_to_ptr.vmem [resolvable:$true] %s58
      %64 = dma.hbm_to_vmem [thread:$0]  %s3, 1024, %s59, [#allocation9], 64, 64, 4
    $region17: #{tpu_custom_call.1} parent=1 // pred_fallthru
      _
    // Predicated region
    $region18: #{tpu_custom_call.1} parent=1 // pred_check
      _
    $region19: #{tpu_custom_call.1} parent=1 // pred_check_branch
      %66 = sbr.rel (0) target = $region21
    $region20: #{tpu_custom_call.1} parent=1 // pred_region
      _
    $region21: #{tpu_custom_call.1} parent=1 // pred_fallthru
      _
    // Predicated region
    $region22: #{tpu_custom_call.1} parent=1 // pred_check
      _
    $region23: #{tpu_custom_call.1} parent=1 // pred_check_branch
      %68 = sbr.rel (0) target = $region25
    $region24: #{tpu_custom_call.1} parent=1 // pred_region
      _
    $region25: #{tpu_custom_call.1} parent=1 // pred_fallthru
      _
    // Predicated region
    $region26: #{tpu_custom_call.1} parent=1 // pred_check
      _
    $region27: #{tpu_custom_call.1} parent=1 // pred_check_branch
      %70 = sbr.rel (0) target = $region29
    $region28: #{tpu_custom_call.1} parent=1 // pred_region
      %s72 = ssub.s32 1024, 1024
      %73 = vsyncadd [#allocation9], %s72
      %s74 = sshll.u32 [#allocation10], 4
      %s75 = int_to_ptr.vmem [resolvable:$true] %s74
      %80 = dma.hbm_to_vmem [thread:$0]  %s6, 1024, %s75, [#allocation9], 64, 64, 4
    $region29: #{tpu_custom_call.1} parent=1 // pred_fallthru
      _
    // Predicated region
    $region30: #{tpu_custom_call.1} parent=1 // pred_check
      _
    $region31: #{tpu_custom_call.1} parent=1 // pred_check_branch
      %82 = sbr.rel (0) target = $region33
    $region32: #{tpu_custom_call.1} parent=1 // pred_region
      _
    $region33: #{tpu_custom_call.1} parent=1 // pred_fallthru
      _
    // Predicated region
    $region34: #{tpu_custom_call.1} parent=1 // pred_check
      _
    $region35: #{tpu_custom_call.1} parent=1 // pred_check_branch
      %84 = sbr.rel (0) target = $region37
    $region36: #{tpu_custom_call.1} parent=1 // pred_region
      _
    $region37: #{tpu_custom_call.1} parent=1 // pred_fallthru
      _
    // Predicated region
    $region38: #{tpu_custom_call.1} parent=1 // pred_check
      _
    $region39: #{tpu_custom_call.1} parent=1 // pred_check_branch
      %86 = sbr.rel (0) target = $region41
    $region40: #{tpu_custom_call.1} parent=1 // pred_region
      %s88 = ssub.s32 1024, 1024
      %89 = vsyncadd [#allocation12], %s88
      %s90 = sshll.u32 [#allocation11], 4
      %s91 = int_to_ptr.vmem [resolvable:$true] %s90
      %96 = dma.hbm_to_vmem [thread:$0]  %s9, 1024, %s91, [#allocation12], 64, 64, 4
    $region41: #{tpu_custom_call.1} parent=1 // pred_fallthru
      _
    // Predicated region
    $region42: #{tpu_custom_call.1} parent=1 // pred_check
      _
    $region43: #{tpu_custom_call.1} parent=1 // pred_check_branch
      %98 = sbr.rel (0) target = $region45
    $region44: #{tpu_custom_call.1} parent=1 // pred_region
      _
    $region45: #{tpu_custom_call.1} parent=1 // pred_fallthru
      _
    // Predicated region
    $region46: #{tpu_custom_call.1} parent=1 // pred_check
      _
    $region47: #{tpu_custom_call.1} parent=1 // pred_check_branch
      %100 = sbr.rel (0) target = $region49
    $region48: #{tpu_custom_call.1} parent=1 // pred_region
      %s102 = ssub.s32 1024, 1024
      %103 = vsyncadd [#allocation12], %s102
      %s104 = sshll.u32 [#allocation13], 4
      %s105 = int_to_ptr.vmem [resolvable:$true] %s104
      %110 = dma.hbm_to_vmem [thread:$0]  %s11, 1024, %s105, [#allocation12], 64, 64, 4
    $region49: #{tpu_custom_call.1} parent=1 // pred_fallthru
      _
    // Predicated region
    $region50: #{tpu_custom_call.1} parent=1 // pred_check
      _
    $region51: #{tpu_custom_call.1} parent=1 // pred_check_branch
      %112 = sbr.rel (0) target = $region53
    $region52: #{tpu_custom_call.1} parent=1 // pred_region
      _
    $region53: #{tpu_custom_call.1} parent=1 // pred_fallthru
      _
    // Predicated region
    $region54: #{tpu_custom_call.1} parent=1 // pred_check
      _
    $region55: #{tpu_custom_call.1} parent=1 // pred_check_branch
      %114 = sbr.rel (0) target = $region57
    $region56: #{tpu_custom_call.1} parent=1 // pred_region
      %115 = dma.done [#allocation3], 128
    $region57: #{tpu_custom_call.1} parent=1 // pred_fallthru
      _
    // Predicated region
    $region58: #{tpu_custom_call.1} parent=1 // pred_check
      _
    $region59: #{tpu_custom_call.1} parent=1 // pred_check_branch
      %117 = sbr.rel (0) target = $region61
    $region60: #{tpu_custom_call.1} parent=1 // pred_region
      %118 = dma.done [#allocation6], 128
    $region61: #{tpu_custom_call.1} parent=1 // pred_fallthru
      _
    // Predicated region
    $region62: #{tpu_custom_call.1} parent=1 // pred_check
      _
    $region63: #{tpu_custom_call.1} parent=1 // pred_check_branch
      %120 = sbr.rel (0) target = $region65
    $region64: #{tpu_custom_call.1} parent=1 // pred_region
      %121 = dma.done [#allocation6], 128
    $region65: #{tpu_custom_call.1} parent=1 // pred_fallthru
      _
    // Predicated region
    $region66: #{tpu_custom_call.1} parent=1 // pred_check
      _
    $region67: #{tpu_custom_call.1} parent=1 // pred_check_branch
      %123 = sbr.rel (0) target = $region69
    $region68: #{tpu_custom_call.1} parent=1 // pred_region
      %124 = dma.done [#allocation9], 1024
    $region69: #{tpu_custom_call.1} parent=1 // pred_fallthru
      _
    // Predicated region
    $region70: #{tpu_custom_call.1} parent=1 // pred_check
      _
    $region71: #{tpu_custom_call.1} parent=1 // pred_check_branch
      %126 = sbr.rel (0) target = $region73
    $region72: #{tpu_custom_call.1} parent=1 // pred_region
      %127 = dma.done [#allocation9], 1024
    $region73: #{tpu_custom_call.1} parent=1 // pred_fallthru
      _
    // Predicated region
    $region74: #{tpu_custom_call.1} parent=1 // pred_check
      _
    $region75: #{tpu_custom_call.1} parent=1 // pred_check_branch
      %129 = sbr.rel (0) target = $region77
    $region76: #{tpu_custom_call.1} parent=1 // pred_region
      %130 = dma.done [#allocation12], 1024
    $region77: #{tpu_custom_call.1} parent=1 // pred_fallthru
      _
    // Predicated region
    $region78: #{tpu_custom_call.1} parent=1 // pred_check
      _
    $region79: #{tpu_custom_call.1} parent=1 // pred_check_branch
      %132 = sbr.rel (0) target = $region81
    $region80: #{tpu_custom_call.1} parent=1 // pred_region
      %133 = dma.done [#allocation12], 1024
    $region81: #{tpu_custom_call.1} parent=1 // pred_fallthru
      _
    %v135 = vld [vmem:[#allocation2] sm:$0xff]
    %v136 = vld [vmem:[#allocation5] sm:$0xff]
    %v137 = vmul.f32 %v135, %v136
    %v138 = vpack.c.bf16 %v137, %v137
    %v139 = vld [vmem:[#allocation8] sm:$0xf]
    %v140 = vld [vmem:[#allocation8 + $0x4] sm:$0xf]
    %v141 = vld [vmem:[#allocation8 + $0x8] sm:$0xf]
    %v142 = vld [vmem:[#allocation8 + $0xc] sm:$0xf]
    %v143 = vld [vmem:[#allocation8 + $0x10] sm:$0xf]
    %v144 = vld [vmem:[#allocation8 + $0x14] sm:$0xf]
    %v145 = vld [vmem:[#allocation8 + $0x18] sm:$0xf]
    %v146 = vld [vmem:[#allocation8 + $0x1c] sm:$0xf]
    %v147 = vld [vmem:[#allocation8 + $0x20] sm:$0xf]
    %v148 = vld [vmem:[#allocation8 + $0x24] sm:$0xf]
    %v149 = vld [vmem:[#allocation8 + $0x28] sm:$0xf]
    %v150 = vld [vmem:[#allocation8 + $0x2c] sm:$0xf]
    %v151 = vld [vmem:[#allocation8 + $0x30] sm:$0xf]
    %v152 = vld [vmem:[#allocation8 + $0x34] sm:$0xf]
    %v153 = vld [vmem:[#allocation8 + $0x38] sm:$0xf]
    %v154 = vld [vmem:[#allocation8 + $0x3c] sm:$0xf]
    %v171 = vunpack.c.l.b16 %v139
    %v172 = vunpack.c.l.b16 %v140
    %v173 = vunpack.c.l.b16 %v141
    %v174 = vunpack.c.l.b16 %v142
    %v175 = vunpack.c.l.b16 %v143
    %v176 = vunpack.c.l.b16 %v144
    %v177 = vunpack.c.l.b16 %v145
    %v178 = vunpack.c.l.b16 %v146
    %v179 = vunpack.c.l.b16 %v147
    %v180 = vunpack.c.l.b16 %v148
    %v181 = vunpack.c.l.b16 %v149
    %v182 = vunpack.c.l.b16 %v150
    %v183 = vunpack.c.l.b16 %v151
    %v184 = vunpack.c.l.b16 %v152
    %v185 = vunpack.c.l.b16 %v153
    %v186 = vunpack.c.l.b16 %v154
    %v187 = vpack.c.b16 %v172, %v171
    %v188 = vpack.c.b16 %v174, %v173
    %v189 = vpack.c.b16 %v176, %v175
    %v190 = vpack.c.b16 %v178, %v177
    %v191 = vpack.c.b16 %v180, %v179
    %v192 = vpack.c.b16 %v182, %v181
    %v193 = vpack.c.b16 %v184, %v183
    %v194 = vpack.c.b16 %v186, %v185
    %203 = vmatprep.subr.bf16.mxu0 0
    %204 = vmatpush1.bf16.msra.mxu0 %v194
    %205 = vmatprep.subr.bf16.mxu0 0
    %206 = vmatpush1.bf16.msra.mxu0 %v193
    %207 = vmatprep.subr.bf16.mxu0 0
    %208 = vmatpush1.bf16.msra.mxu0 %v192
    %209 = vmatprep.subr.bf16.mxu0 0
    %210 = vmatpush1.bf16.msra.mxu0 %v191
    %211 = vmatprep.subr.bf16.mxu0 0
    %212 = vmatpush1.bf16.msra.mxu0 %v190
    %213 = vmatprep.subr.bf16.mxu0 0
    %214 = vmatpush1.bf16.msra.mxu0 %v189
    %215 = vmatprep.subr.bf16.mxu0 0
    %216 = vmatpush1.bf16.msra.mxu0 %v188
    %217 = vmatprep.subr.bf16.mxu0 0
    %218 = vmatpush1.bf16.msra.mxu0 %v187
    %219 = vmatprep.subr.bf16.mxu0 0
    %220 = vmatpush2.bf16.msra.mxu0 0
    %221 = vmatprep.subr.bf16.mxu0 0
    %222 = vmatpush2.bf16.msra.mxu0 0
    %223 = vmatprep.subr.bf16.mxu0 0
    %224 = vmatpush2.bf16.msra.mxu0 0
    %225 = vmatprep.subr.bf16.mxu0 0
    %226 = vmatpush2.bf16.msra.mxu0 0
    %227 = vmatprep.subr.bf16.mxu0 0
    %228 = vmatpush2.bf16.msra.mxu0 0
    %229 = vmatprep.subr.bf16.mxu0 0
    %230 = vmatpush2.bf16.msra.mxu0 0
    %231 = vmatprep.subr.bf16.mxu0 0
    %232 = vmatpush2.bf16.msra.mxu0 0
    %233 = vmatprep.subr.bf16.mxu0 0
    %234 = vmatpush2.bf16.msra.mxu0 0
    %235 = vmatprep.mubr.bf16.mxu0 0
    %236 = vmatmul.mubr.bf16.gmra.mxu0 %v138
    %v237 = vpop.f32.mrf.mxu0
    %v238 = vadd.f32 0.0, %v237
    %v239 = vpop.f32.mrf.mxu0
    %v240 = vpop.f32.mrf.mxu0
    %v241 = vpop.f32.mrf.mxu0
    %242 = vdwg.mxu0
    %v243 = vld [vmem:[%s4] sm:$0x1]
    %v244 = vld [vmem:[%s5] sm:$0x1]
    %v245 = vrot.slane %v238, 4
    %v246 = vadd.f32 %v238, %v245
    %v247 = vrot.slane %v246, 2
    %v248 = vadd.f32 %v246, %v247
    %v249 = vrot.slane %v248, 1
    %v250 = vadd.f32 %v248, %v249
    %v251 = vmul.f32 %v238, %v238
    %v252 = vrot.slane %v251, 4
    %v253 = vadd.f32 %v251, %v252
    %v254 = vrot.slane %v253, 2
    %v255 = vadd.f32 %v253, %v254
    %v256 = vrot.slane %v255, 1
    %v257 = vadd.f32 %v255, %v256
    %v258 = vmul.f32 %v250, 0.125
    %v259 = vmul.f32 %v257, 0.125
    %v260 = vmul.f32 %v258, %v258
    %v261 = vsub.f32 %v259, %v260
    %v262 = vmax.f32 %v261, 0.0
    %v263 = vadd.f32 %v262, 1e-05
    %v264 = vrsqrt.pop %v263
    %v265 = vmul.f32 %v243, %v264
    %v266 = vmul.f32 %v258, %v265
    %v267 = vsub.f32 %v244, %v266
    %v269 = vlaneseq
    %v270 = vshrl.u32 %v269, 7
    %v271 = vsub.s32 0, %v270
    %v272 = vrot.slane %v265, %v271
    %v274 = vmul.f32 %v238, %v272
    %v276 = vlaneseq
    %v277 = vshrl.u32 %v276, 7
    %v278 = vsub.s32 0, %v277
    %v279 = vrot.slane %v267, %v278
    %v281 = vadd.f32 %v274, %v279
    %v282 = vmax.f32 %v281, 0.0
    %v283 = vpack.c.bf16 %v282, %v282
    %v284 = vld [vmem:[#allocation10] sm:$0xf]
    %v285 = vld [vmem:[#allocation10 + $0x4] sm:$0xf]
    %v286 = vld [vmem:[#allocation10 + $0x8] sm:$0xf]
    %v287 = vld [vmem:[#allocation10 + $0xc] sm:$0xf]
    %v288 = vld [vmem:[#allocation10 + $0x10] sm:$0xf]
    %v289 = vld [vmem:[#allocation10 + $0x14] sm:$0xf]
    %v290 = vld [vmem:[#allocation10 + $0x18] sm:$0xf]
    %v291 = vld [vmem:[#allocation10 + $0x1c] sm:$0xf]
    %v292 = vld [vmem:[#allocation10 + $0x20] sm:$0xf]
    %v293 = vld [vmem:[#allocation10 + $0x24] sm:$0xf]
    %v294 = vld [vmem:[#allocation10 + $0x28] sm:$0xf]
    %v295 = vld [vmem:[#allocation10 + $0x2c] sm:$0xf]
    %v296 = vld [vmem:[#allocation10 + $0x30] sm:$0xf]
    %v297 = vld [vmem:[#allocation10 + $0x34] sm:$0xf]
    %v298 = vld [vmem:[#allocation10 + $0x38] sm:$0xf]
    %v299 = vld [vmem:[#allocation10 + $0x3c] sm:$0xf]
    %v316 = vunpack.c.l.b16 %v284
    %v317 = vunpack.c.l.b16 %v285
    %v318 = vunpack.c.l.b16 %v286
    %v319 = vunpack.c.l.b16 %v287
    %v320 = vunpack.c.l.b16 %v288
    %v321 = vunpack.c.l.b16 %v289
    %v322 = vunpack.c.l.b16 %v290
    %v323 = vunpack.c.l.b16 %v291
    %v324 = vunpack.c.l.b16 %v292
    %v325 = vunpack.c.l.b16 %v293
    %v326 = vunpack.c.l.b16 %v294
    %v327 = vunpack.c.l.b16 %v295
    %v328 = vunpack.c.l.b16 %v296
    %v329 = vunpack.c.l.b16 %v297
    %v330 = vunpack.c.l.b16 %v298
    %v331 = vunpack.c.l.b16 %v299
    %v332 = vpack.c.b16 %v317, %v316
    %v333 = vpack.c.b16 %v319, %v318
    %v334 = vpack.c.b16 %v321, %v320
    %v335 = vpack.c.b16 %v323, %v322
    %v336 = vpack.c.b16 %v325, %v324
    %v337 = vpack.c.b16 %v327, %v326
    %v338 = vpack.c.b16 %v329, %v328
    %v339 = vpack.c.b16 %v331, %v330
    %348 = vmatprep.subr.bf16.mxu0 0
    %349 = vmatpush1.bf16.msra.mxu0 %v339
    %350 = vmatprep.subr.bf16.mxu0 0
    %351 = vmatpush1.bf16.msra.mxu0 %v338
    %352 = vmatprep.subr.bf16.mxu0 0
    %353 = vmatpush1.bf16.msra.mxu0 %v337
    %354 = vmatprep.subr.bf16.mxu0 0
    %355 = vmatpush1.bf16.msra.mxu0 %v336
    %356 = vmatprep.subr.bf16.mxu0 0
    %357 = vmatpush1.bf16.msra.mxu0 %v335
    %358 = vmatprep.subr.bf16.mxu0 0
    %359 = vmatpush1.bf16.msra.mxu0 %v334
    %360 = vmatprep.subr.bf16.mxu0 0
    %361 = vmatpush1.bf16.msra.mxu0 %v333
    %362 = vmatprep.subr.bf16.mxu0 0
    %363 = vmatpush1.bf16.msra.mxu0 %v332
    %364 = vmatprep.subr.bf16.mxu0 0
    %365 = vmatpush2.bf16.msra.mxu0 0
    %366 = vmatprep.subr.bf16.mxu0 0
    %367 = vmatpush2.bf16.msra.mxu0 0
    %368 = vmatprep.subr.bf16.mxu0 0
    %369 = vmatpush2.bf16.msra.mxu0 0
    %370 = vmatprep.subr.bf16.mxu0 0
    %371 = vmatpush2.bf16.msra.mxu0 0
    %372 = vmatprep.subr.bf16.mxu0 0
    %373 = vmatpush2.bf16.msra.mxu0 0
    %374 = vmatprep.subr.bf16.mxu0 0
    %375 = vmatpush2.bf16.msra.mxu0 0
    %376 = vmatprep.subr.bf16.mxu0 0
    %377 = vmatpush2.bf16.msra.mxu0 0
    %378 = vmatprep.subr.bf16.mxu0 0
    %379 = vmatpush2.bf16.msra.mxu0 0
    %380 = vmatprep.mubr.bf16.mxu0 0
    %381 = vmatmul.mubr.bf16.gmra.mxu0 %v283
    %v382 = vpop.f32.mrf.mxu0
    %v383 = vadd.f32 0.0, %v382
    %v384 = vpop.f32.mrf.mxu0
    %v385 = vpop.f32.mrf.mxu0
    %v386 = vpop.f32.mrf.mxu0
    %387 = vdwg.mxu0
    %v388 = vld [vmem:[%s7] sm:$0x1]
    %v389 = vld [vmem:[%s8] sm:$0x1]
    %v390 = vrot.slane %v383, 4
    %v391 = vadd.f32 %v383, %v390
    %v392 = vrot.slane %v391, 2
    %v393 = vadd.f32 %v391, %v392
    %v394 = vrot.slane %v393, 1
    %v395 = vadd.f32 %v393, %v394
    %v396 = vmul.f32 %v383, %v383
    %v397 = vrot.slane %v396, 4
    %v398 = vadd.f32 %v396, %v397
    %v399 = vrot.slane %v398, 2
    %v400 = vadd.f32 %v398, %v399
    %v401 = vrot.slane %v400, 1
    %v402 = vadd.f32 %v400, %v401
    %v403 = vmul.f32 %v395, 0.125
    %v404 = vmul.f32 %v402, 0.125
    %v405 = vmul.f32 %v403, %v403
    %v406 = vsub.f32 %v404, %v405
    %v407 = vmax.f32 %v406, 0.0
    %v408 = vadd.f32 %v407, 1e-05
    %v409 = vrsqrt.pop %v408
    %v410 = vmul.f32 %v388, %v409
    %v411 = vmul.f32 %v403, %v410
    %v412 = vsub.f32 %v389, %v411
    %v414 = vlaneseq
    %v415 = vshrl.u32 %v414, 7
    %v416 = vsub.s32 0, %v415
    %v417 = vrot.slane %v410, %v416
    %v419 = vmul.f32 %v383, %v417
    %v421 = vlaneseq
    %v422 = vshrl.u32 %v421, 7
    %v423 = vsub.s32 0, %v422
    %v424 = vrot.slane %v412, %v423
    %v426 = vadd.f32 %v419, %v424
    %v427 = vmax.f32 %v426, 0.0
    %v428 = vld [vmem:[#allocation7] sm:$0xff]
    %v429 = vmul.f32 %v427, %v428
    %v430 = vrot.slane %v429, 4
    %v431 = vadd.f32 %v429, %v430
    %v432 = vrot.slane %v431, 2
    %v433 = vadd.f32 %v431, %v432
    %v434 = vrot.slane %v433, 1
    %v435 = vadd.f32 %v433, %v434
    %v436 = vmul.f32 %v435, 0.125
    %v437 = vpack.c.bf16 %v436, %v436
    %v438 = vld [vmem:[#allocation11] sm:$0xf]
    %v439 = vld [vmem:[#allocation11 + $0x4] sm:$0xf]
    %v440 = vld [vmem:[#allocation11 + $0x8] sm:$0xf]
    %v441 = vld [vmem:[#allocation11 + $0xc] sm:$0xf]
    %v442 = vld [vmem:[#allocation11 + $0x10] sm:$0xf]
    %v443 = vld [vmem:[#allocation11 + $0x14] sm:$0xf]
    %v444 = vld [vmem:[#allocation11 + $0x18] sm:$0xf]
    %v445 = vld [vmem:[#allocation11 + $0x1c] sm:$0xf]
    %v446 = vld [vmem:[#allocation11 + $0x20] sm:$0xf]
    %v447 = vld [vmem:[#allocation11 + $0x24] sm:$0xf]
    %v448 = vld [vmem:[#allocation11 + $0x28] sm:$0xf]
    %v449 = vld [vmem:[#allocation11 + $0x2c] sm:$0xf]
    %v450 = vld [vmem:[#allocation11 + $0x30] sm:$0xf]
    %v451 = vld [vmem:[#allocation11 + $0x34] sm:$0xf]
    %v452 = vld [vmem:[#allocation11 + $0x38] sm:$0xf]
    %v453 = vld [vmem:[#allocation11 + $0x3c] sm:$0xf]
    %v454 = vld [vmem:[%s10] sm:$0x1]
    %v471 = vunpack.c.l.b16 %v438
    %v472 = vunpack.c.l.b16 %v439
    %v473 = vunpack.c.l.b16 %v440
    %v474 = vunpack.c.l.b16 %v441
    %v475 = vunpack.c.l.b16 %v442
    %v476 = vunpack.c.l.b16 %v443
    %v477 = vunpack.c.l.b16 %v444
    %v478 = vunpack.c.l.b16 %v445
    %v479 = vunpack.c.l.b16 %v446
    %v480 = vunpack.c.l.b16 %v447
    %v481 = vunpack.c.l.b16 %v448
    %v482 = vunpack.c.l.b16 %v449
    %v483 = vunpack.c.l.b16 %v450
    %v484 = vunpack.c.l.b16 %v451
    %v485 = vunpack.c.l.b16 %v452
    %v486 = vunpack.c.l.b16 %v453
    %v487 = vpack.c.b16 %v472, %v471
    %v488 = vpack.c.b16 %v474, %v473
    %v489 = vpack.c.b16 %v476, %v475
    %v490 = vpack.c.b16 %v478, %v477
    %v491 = vpack.c.b16 %v480, %v479
    %v492 = vpack.c.b16 %v482, %v481
    %v493 = vpack.c.b16 %v484, %v483
    %v494 = vpack.c.b16 %v486, %v485
    %503 = vmatprep.subr.bf16.mxu0 0
    %504 = vmatpush1.bf16.msra.mxu0 %v494
    %505 = vmatprep.subr.bf16.mxu0 0
    %506 = vmatpush1.bf16.msra.mxu0 %v493
    %507 = vmatprep.subr.bf16.mxu0 0
    %508 = vmatpush1.bf16.msra.mxu0 %v492
    %509 = vmatprep.subr.bf16.mxu0 0
    %510 = vmatpush1.bf16.msra.mxu0 %v491
    %511 = vmatprep.subr.bf16.mxu0 0
    %512 = vmatpush1.bf16.msra.mxu0 %v490
    %513 = vmatprep.subr.bf16.mxu0 0
    %514 = vmatpush1.bf16.msra.mxu0 %v489
    %515 = vmatprep.subr.bf16.mxu0 0
    %516 = vmatpush1.bf16.msra.mxu0 %v488
    %517 = vmatprep.subr.bf16.mxu0 0
    %518 = vmatpush1.bf16.msra.mxu0 %v487
    %519 = vmatprep.subr.bf16.mxu0 0
    %520 = vmatpush2.bf16.msra.mxu0 0
    %521 = vmatprep.subr.bf16.mxu0 0
    %522 = vmatpush2.bf16.msra.mxu0 0
    %523 = vmatprep.subr.bf16.mxu0 0
    %524 = vmatpush2.bf16.msra.mxu0 0
    %525 = vmatprep.subr.bf16.mxu0 0
    %526 = vmatpush2.bf16.msra.mxu0 0
    %527 = vmatprep.subr.bf16.mxu0 0
    %528 = vmatpush2.bf16.msra.mxu0 0
    %529 = vmatprep.subr.bf16.mxu0 0
    %530 = vmatpush2.bf16.msra.mxu0 0
    %531 = vmatprep.subr.bf16.mxu0 0
    %532 = vmatpush2.bf16.msra.mxu0 0
    %533 = vmatprep.subr.bf16.mxu0 0
    %534 = vmatpush2.bf16.msra.mxu0 0
    %535 = vmatprep.mubr.bf16.mxu0 0
    %536 = vmatmul.mubr.bf16.gmra.mxu0 %v437
    %v537 = vpop.f32.mrf.mxu0
    %v538 = vadd.f32 %v454, %v537
    %v539 = vpop.f32.mrf.mxu0
    %v540 = vpop.f32.mrf.mxu0
    %v541 = vpop.f32.mrf.mxu0
    %542 = vdwg.mxu0
    %v543 = vmax.f32 %v538, 0.0
    %v544 = vpack.c.bf16 %v543, %v543
    %v545 = vld [vmem:[#allocation13] sm:$0xf]
    %v546 = vld [vmem:[#allocation13 + $0x4] sm:$0xf]
    %v547 = vld [vmem:[#allocation13 + $0x8] sm:$0xf]
    %v548 = vld [vmem:[#allocation13 + $0xc] sm:$0xf]
    %v549 = vld [vmem:[#allocation13 + $0x10] sm:$0xf]
    %v550 = vld [vmem:[#allocation13 + $0x14] sm:$0xf]
    %v551 = vld [vmem:[#allocation13 + $0x18] sm:$0xf]
    %v552 = vld [vmem:[#allocation13 + $0x1c] sm:$0xf]
    %v553 = vld [vmem:[#allocation13 + $0x20] sm:$0xf]
    %v554 = vld [vmem:[#allocation13 + $0x24] sm:$0xf]
    %v555 = vld [vmem:[#allocation13 + $0x28] sm:$0xf]
    %v556 = vld [vmem:[#allocation13 + $0x2c] sm:$0xf]
    %v557 = vld [vmem:[#allocation13 + $0x30] sm:$0xf]
    %v558 = vld [vmem:[#allocation13 + $0x34] sm:$0xf]
    %v559 = vld [vmem:[#allocation13 + $0x38] sm:$0xf]
    %v560 = vld [vmem:[#allocation13 + $0x3c] sm:$0xf]
    %v561 = vld [vmem:[%s12] sm:$0x1]
    %v578 = vunpack.c.l.b16 %v545
    %v579 = vunpack.c.l.b16 %v546
    %v580 = vunpack.c.l.b16 %v547
    %v581 = vunpack.c.l.b16 %v548
    %v582 = vunpack.c.l.b16 %v549
    %v583 = vunpack.c.l.b16 %v550
    %v584 = vunpack.c.l.b16 %v551
    %v585 = vunpack.c.l.b16 %v552
    %v586 = vunpack.c.l.b16 %v553
    %v587 = vunpack.c.l.b16 %v554
    %v588 = vunpack.c.l.b16 %v555
    %v589 = vunpack.c.l.b16 %v556
    %v590 = vunpack.c.l.b16 %v557
    %v591 = vunpack.c.l.b16 %v558
    %v592 = vunpack.c.l.b16 %v559
    %v593 = vunpack.c.l.b16 %v560
    %v594 = vpack.c.b16 %v579, %v578
    %v595 = vpack.c.b16 %v581, %v580
    %v596 = vpack.c.b16 %v583, %v582
    %v597 = vpack.c.b16 %v585, %v584
    %v598 = vpack.c.b16 %v587, %v586
    %v599 = vpack.c.b16 %v589, %v588
    %v600 = vpack.c.b16 %v591, %v590
    %v601 = vpack.c.b16 %v593, %v592
    %610 = vmatprep.subr.bf16.mxu0 0
    %611 = vmatpush1.bf16.msra.mxu0 %v601
    %612 = vmatprep.subr.bf16.mxu0 0
    %613 = vmatpush1.bf16.msra.mxu0 %v600
    %614 = vmatprep.subr.bf16.mxu0 0
    %615 = vmatpush1.bf16.msra.mxu0 %v599
    %616 = vmatprep.subr.bf16.mxu0 0
    %617 = vmatpush1.bf16.msra.mxu0 %v598
    %618 = vmatprep.subr.bf16.mxu0 0
    %619 = vmatpush1.bf16.msra.mxu0 %v597
    %620 = vmatprep.subr.bf16.mxu0 0
    %621 = vmatpush1.bf16.msra.mxu0 %v596
    %622 = vmatprep.subr.bf16.mxu0 0
    %623 = vmatpush1.bf16.msra.mxu0 %v595
    %624 = vmatprep.subr.bf16.mxu0 0
    %625 = vmatpush1.bf16.msra.mxu0 %v594
    %626 = vmatprep.subr.bf16.mxu0 0
    %627 = vmatpush2.bf16.msra.mxu0 0
    %628 = vmatprep.subr.bf16.mxu0 0
    %629 = vmatpush2.bf16.msra.mxu0 0
    %630 = vmatprep.subr.bf16.mxu0 0
    %631 = vmatpush2.bf16.msra.mxu0 0
    %632 = vmatprep.subr.bf16.mxu0 0
    %633 = vmatpush2.bf16.msra.mxu0 0
    %634 = vmatprep.subr.bf16.mxu0 0
    %635 = vmatpush2.bf16.msra.mxu0 0
    %636 = vmatprep.subr.bf16.mxu0 0
    %637 = vmatpush2.bf16.msra.mxu0 0
    %638 = vmatprep.subr.bf16.mxu0 0
    %639 = vmatpush2.bf16.msra.mxu0 0
    %640 = vmatprep.subr.bf16.mxu0 0
    %641 = vmatpush2.bf16.msra.mxu0 0
    %642 = vmatprep.mubr.bf16.mxu0 0
    %643 = vmatmul.mubr.bf16.gmra.mxu0 %v544
    %v644 = vpop.f32.mrf.mxu0
    %v645 = vadd.f32 %v561, %v644
    %v646 = vpop.f32.mrf.mxu0
    %v647 = vpop.f32.mrf.mxu0
    %v648 = vpop.f32.mrf.mxu0
    %649 = vdwg.mxu0
    %650 = vst [vmem:[#allocation14] sm:$0x1] %v645
    // Predicated region
    $region82: #{tpu_custom_call.1} parent=1 // pred_check
      _
    $region83: #{tpu_custom_call.1} parent=1 // pred_check_branch
      %652 = sbr.rel (0) target = $region85
    $region84: #{tpu_custom_call.1} parent=1 // pred_region
      %s654 = ssub.s32 16, 16
      %655 = vsyncadd [#allocation4], %s654
      %s657 = sshll.u32 [#allocation14], 4
      %s658 = int_to_ptr.vmem [resolvable:$true] %s657
      %660 = dma.vmem_to_hbm [thread:$0]  %s658, 16, %s13, [#allocation4]
    $region85: #{tpu_custom_call.1} parent=1 // pred_fallthru
      _
    // Predicated region
    $region86: #{tpu_custom_call.1} parent=1 // pred_check
      _
    $region87: #{tpu_custom_call.1} parent=1 // pred_check_branch
      %662 = sbr.rel (0) target = $region89
    $region88: #{tpu_custom_call.1} parent=1 // pred_region
      %663 = dma.done [#allocation4], 16
    $region89: #{tpu_custom_call.1} parent=1 // pred_fallthru
      _
    %664 = vsyncpa [#allocation3], 1
    %665 = vsyncpa [#allocation6], 1
    %666 = vsyncpa [#allocation9], 1
    %667 = vsyncpa [#allocation12], 1
    %668 = vsyncpa [#allocation4], 1

</llo_original>
